<compile_context>
chip_gen: v6e
topology: v6e:2x2x1
jax: 0.10.0
libtpu: 0.0.40
codegen_flags: <defaults>
</compile_context>

<pallas_src>
import jax
import jax.numpy as jnp
import numpy as np
from jax import lax
from jax.experimental import pallas as pl
from jax.experimental.pallas import tpu as pltpu

K_SIZE = 7          # SpatialAttention kernel_size
PAD = K_SIZE // 2   # padding = 3

TILE_TARGET_BYTES = 6 << 20   # ~4-8 MiB activation tile amortizes ~0.35us/step
VMEM_BUDGET = 40 << 20        # < v7x 64 MiB physical; > v5e/v6e scoped defaults


def _wsattention_kernel(y_ref, fc1t_ref, fc2t_ref, banda_ref, bandm_ref,
                        bn_ref, o_ref):
    # y_ref block: (TB, W, C*H), lane-dense; dtype = caller's dtype (bf16/f32).
    TB, W, CH = y_ref.shape
    y = y_ref[...].astype(jnp.float32)            # upcast once; compute in f32

    # ---- Channel attention (CBAM-style) over the W axis ----
    avg = jnp.mean(y, axis=2)                     # (TB, W)  lane reduce
    mx = jnp.max(y, axis=2)                       # (TB, W)
    pooled = jnp.concatenate([avg, mx], axis=0)   # (2*TB, W) -> one MXU pass
    h1 = jnp.maximum(
        jnp.dot(pooled, fc1t_ref[...], preferred_element_type=jnp.float32),
        0.0)                                      # (2*TB, hid)
    mlp = jnp.dot(h1, fc2t_ref[...],
                  preferred_element_type=jnp.float32)   # (2*TB, W)
    ca = jax.nn.sigmoid(mlp[:TB] + mlp[TB:])      # (TB, W)

    y_ca = y * ca[:, :, None]                     # (TB, W, CH)

    # ---- Spatial attention: whole 2x7x7 conv = two lane-aligned MXU dots ----
    # (band matrices precomputed in the wrapper; zero in-kernel data shuffling)
    avg_sp = jnp.mean(y_ca, axis=1)               # (TB, CH) sublane reduce
    max_sp = jnp.max(y_ca, axis=1)                # (TB, CH)
    conv = (jnp.dot(avg_sp, banda_ref[...], preferred_element_type=jnp.float32)
            + jnp.dot(max_sp, bandm_ref[...],
                      preferred_element_type=jnp.float32))   # (TB, CH)
    sa = jax.nn.sigmoid(conv)[:, None, :]         # (TB, 1, CH)

    # ---- BatchNorm2d (eval, folded) + ReLU: fused elementwise tail ----
    bn = bn_ref[...]                              # (2, W)
    scale = bn[0:1, :][:, :, None]                # (1, W, 1)
    shift = bn[1:2, :][:, :, None]
    o_ref[...] = jnp.maximum(y_ca * sa * scale + shift, 0.0).astype(o_ref.dtype)


def _conv_band_matrices(sa_w, C, H):
    """Fold BOTH conv directions into two (C*H, C*H) band matrices so the
    spatial conv becomes two MXU dots inside the kernel:
      band[ch][c_in*H + h_in, c_out*H + h_out] =
          sa_w[0, ch, c_in - c_out + PAD, h_in - h_out + PAD]
    (zero outside kernel support — this also reproduces the zero padding at
    both the C and H edges)."""
    w = jnp.asarray(sa_w, jnp.float32)[0]                       # (2, 7, 7)
    di = jnp.arange(C)[:, None] - jnp.arange(C)[None, :] + PAD  # (C_in, C_out)
    dj = jnp.arange(H)[:, None] - jnp.arange(H)[None, :] + PAD  # (H_in, H_out)
    valid = (((di >= 0) & (di < K_SIZE))[:, None, :, None]
             & ((dj >= 0) & (dj < K_SIZE))[None, :, None, :])   # (C,H,C,H)
    dic = jnp.clip(di, 0, K_SIZE - 1)
    djc = jnp.clip(dj, 0, K_SIZE - 1)
    taps = w[:, dic[:, None, :, None], djc[None, :, None, :]]   # (2,C,H,C,H)
    band = jnp.where(valid[None], taps, 0.0).reshape(2, C * H, C * H)
    return band[0], band[1]                                     # avg, max


def _num_tensorcores_per_chip():
    """Best-effort generation detection.  v5e / v6e have 1 TensorCore per
    chip; default conservatively to 2 (costs at most one extra grid step)."""
    try:
        kind = jax.devices()[0].device_kind.lower()
    except Exception:
        return 2
    if any(t in kind for t in ("v5 lite", "v5e", "v5litepod", "v6 lite", "v6e", "v6")):
        return 1
    return 2


def _pick_block_b(B, W, CH, dtype, weight_bytes):
    """Batch TB elements per grid step: ~6 MiB HBM tile, capped by a 40 MiB
    VMEM budget (double-buffered in/out + ~4 f32-sized in-kernel temps)."""
    itemsize = jnp.dtype(dtype).itemsize
    row_hbm = W * CH * itemsize
    row_vmem = W * CH * (4 * itemsize + 4 * 4)
    vmem_cap = max((VMEM_BUDGET - 2 * weight_bytes - (4 << 20)) // row_vmem, 1)
    tb = max(1, min(TILE_TARGET_BYTES // max(row_hbm, 1), vmem_cap))
    if _num_tensorcores_per_chip() >= 2 and B >= 2:
        tb = min(tb, -(-B // 2))   # keep >= 2 grid steps so both TCs get work
    return int(max(1, min(tb, B)))


def ws_attention(x, fc1_w, fc2_w, sa_w, bn_scale, bn_shift, block_b=None):
    B, C, W, H = x.shape
    CH = C * H
    hid = fc1_w.shape[0]
    # torch.reshape semantics (row-major): (B,C,W,H) -> (B,W,C,H) -> (B,W,C*H)
    # is one free contiguous reshape.  HBM I/O stays in x's dtype.
    y = x.reshape(B, W, CH)
    dtype = y.dtype

    fc1_t = jnp.asarray(fc1_w, jnp.float32).T              # (W, hid)
    fc2_t = jnp.asarray(fc2_w, jnp.float32).T              # (hid, W)
    band_avg, band_max = _conv_band_matrices(sa_w, C, H)   # (CH, CH) each
    bn = jnp.stack([jnp.asarray(bn_scale, jnp.float32),
                    jnp.asarray(bn_shift, jnp.float32)])   # (2, W)

    weight_bytes = 4 * (fc1_t.size + fc2_t.size + band_avg.size
                        + band_max.size + bn.size)
    if block_b is None:
        block_b = _pick_block_b(B, W, CH, dtype, weight_bytes)
    grid = -(-B // block_b)
    b_pad = grid * block_b
    if b_pad != B:
        # Pad the batch instead of collapsing the tile to a divisor of B.
        y = jnp.pad(y, ((0, b_pad - B), (0, 0), (0, 0)))

    out = pl.pallas_call(
        _wsattention_kernel,
        out_shape=jax.ShapeDtypeStruct((b_pad, W, CH), dtype),
        grid_spec=pltpu.PrefetchScalarGridSpec(
            num_scalar_prefetch=0,
            grid=(grid,),
            in_specs=[
                pl.BlockSpec((block_b, W, CH), lambda b: (b, 0, 0)),
                pl.BlockSpec((W, hid), lambda b: (0, 0)),
                pl.BlockSpec((hid, W), lambda b: (0, 0)),
                pl.BlockSpec((CH, CH), lambda b: (0, 0)),
                pl.BlockSpec((CH, CH), lambda b: (0, 0)),
                pl.BlockSpec((2, W), lambda b: (0, 0)),
            ],
            out_specs=pl.BlockSpec((block_b, W, CH), lambda b: (b, 0, 0)),
        ),
        compiler_params=pltpu.CompilerParams(
            dimension_semantics=("parallel",),
            vmem_limit_bytes=VMEM_BUDGET),
    )(y, fc1_t, fc2_t, band_avg, band_max, bn)
    if b_pad != B:
        out = out[:B]
    return out.reshape(B, C, W, H)


def ws_attention_ref(x, fc1_w, fc2_w, sa_w, bn_scale, bn_shift):
    """Pure-JAX reference matching the PyTorch forward (p=0, bn in eval)."""
    B, C, W, H = x.shape
    y = x.reshape(B, W, C, H).astype(jnp.float32)
    # channel attention
    avg = jnp.mean(y, axis=(2, 3))
    mx = jnp.max(y, axis=(2, 3))

    def mlp(v):
        return jnp.maximum(v @ fc1_w.T, 0.0) @ fc2_w.T

    ca = jax.nn.sigmoid(mlp(avg) + mlp(mx))[:, :, None, None]
    y = y * ca
    # spatial attention
    sp = jnp.concatenate(
        [jnp.mean(y, axis=1, keepdims=True), jnp.max(y, axis=1, keepdims=True)],
        axis=1)
    conv = lax.conv_general_dilated(
        sp, sa_w, (1, 1), [(PAD, PAD), (PAD, PAD)],
        dimension_numbers=("NCHW", "OIHW", "NCHW"))
    y = y * jax.nn.sigmoid(conv)
    # bn (eval, folded) + relu
    y = y * bn_scale[None, :, None, None] + bn_shift[None, :, None, None]
    y = jnp.maximum(y, 0.0)
    return y.reshape(B, C, W, H)


if __name__ == "__main__":
    # x is NCHW; after the in-forward reshape the channel dim is W, so
    # in_planes = W.  C*H = 128 keeps the kernel's lane dim one full vreg row.
    B, C, W, H = 4, 8, 16, 16
    ratio = 8
    hid = max(W // ratio, 1)  # 2

    key = jax.random.PRNGKey(0)
    kx, k1, k2, k3, k4, k5 = jax.random.split(key, 6)
    x = jax.random.normal(kx, (B, C, W, H), jnp.float32)

    # ChannelAttention shared MLP (1x1 convs, no bias): fc1 (hid, W), fc2 (W, hid)
    fc1_w = 0.1 * jax.random.normal(k1, (hid, W), jnp.float32)
    fc2_w = 0.1 * jax.random.normal(k2, (W, hid), jnp.float32)
    # SpatialAttention conv: Conv2d(2, 1, 7, padding=3, bias=False) -> (1, 2, 7, 7)
    sa_w = 0.1 * jax.random.normal(k3, (1, 2, K_SIZE, K_SIZE), jnp.float32)
    # BatchNorm2d(in_planes=W), eval mode: fold into per-channel scale/shift.
    gamma = 1.0 + 0.1 * jax.random.normal(k4, (W,), jnp.float32)
    beta = 0.1 * jax.random.normal(k5, (W,), jnp.float32)
    running_mean = jnp.zeros((W,), jnp.float32)
    running_var = jnp.ones((W,), jnp.float32)
    eps = 1e-5
    inv_std = 1.0 / jnp.sqrt(running_var + eps)
    bn_scale = gamma * inv_std                            # (W,)
    bn_shift = beta - running_mean * gamma * inv_std      # (W,)

    ref = ws_attention_ref(x, fc1_w, fc2_w, sa_w, bn_scale, bn_shift)

    # f32 HBM-I/O path: tight tolerance validates the folded-conv band matrices.
    out_f32 = jax.block_until_ready(
        ws_attention(x, fc1_w, fc2_w, sa_w, bn_scale, bn_shift))
    np.testing.assert_allclose(np.asarray(out_f32), np.asarray(ref),
                               rtol=1e-4, atol=1e-4)

    # bf16 HBM-I/O path (recommended deployment dtype: ~2x less HBM traffic on
    # this memory-bound kernel); error comes only from the input/output cast.
    out_bf16 = jax.block_until_ready(
        ws_attention(x.astype(jnp.bfloat16), fc1_w, fc2_w, sa_w,
                     bn_scale, bn_shift))
    np.testing.assert_allclose(np.asarray(out_bf16, dtype=np.float32),
                               np.asarray(ref), rtol=5e-2, atol=5e-2)

    print("KERNEL_OK")
</pallas_src>

<mosaic_0001>
module attributes {stable_mosaic.version = 11 : i64} {
  func.func @_wsattention_kernel(%arg0: i32, %arg1: memref<2x16x128xf32, #tpu.memory_space<vmem>>, %arg2: memref<16x2xf32, #tpu.memory_space<vmem>>, %arg3: memref<2x16xf32, #tpu.memory_space<vmem>>, %arg4: memref<128x128xf32, #tpu.memory_space<vmem>>, %arg5: memref<128x128xf32, #tpu.memory_space<vmem>>, %arg6: memref<2x16xf32, #tpu.memory_space<vmem>>, %arg7: memref<2x16x128xf32, #tpu.memory_space<vmem>>) attributes {dimension_semantics = [#tpu.dimension_semantics<parallel>], iteration_bounds = array<i64: 2>, scalar_prefetch = 0 : i64, scratch_operands = 0 : i64, tpu.core_type = #tpu.core_type<tc>, window_params = [{transform_indices = @transform_0, window_bounds = array<i64: 2, 16, 128>}, {pipeline_mode = #tpu.pipeline_mode<synchronous>, transform_indices = @transform_1, window_bounds = array<i64: 16, 2>}, {pipeline_mode = #tpu.pipeline_mode<synchronous>, transform_indices = @transform_2, window_bounds = array<i64: 2, 16>}, {pipeline_mode = #tpu.pipeline_mode<synchronous>, transform_indices = @transform_3, window_bounds = array<i64: 128, 128>}, {pipeline_mode = #tpu.pipeline_mode<synchronous>, transform_indices = @transform_4, window_bounds = array<i64: 128, 128>}, {pipeline_mode = #tpu.pipeline_mode<synchronous>, transform_indices = @transform_5, window_bounds = array<i64: 2, 16>}, {transform_indices = @transform_6, window_bounds = array<i64: 2, 16, 128>}]} {
    %c0 = arith.constant 0 : index
    %c0_0 = arith.constant 0 : index
    %c0_1 = arith.constant 0 : index
    %0 = vector.load %arg1[%c0, %c0_0, %c0_1] : memref<2x16x128xf32, #tpu.memory_space<vmem>>, vector<2x16x128xf32>
    %cst = arith.constant dense<0.000000e+00> : vector<2x16xf32>
    %1 = vector.multi_reduction <add>, %0, %cst [2] : vector<2x16x128xf32> to vector<2x16xf32>
    %cst_2 = arith.constant 1.280000e+02 : f32
    %2 = vector.broadcast %cst_2 : f32 to vector<2x16xf32>
    %3 = arith.divf %1, %2 : vector<2x16xf32>
    %cst_3 = arith.constant dense<0xFF800000> : vector<2x16xf32>
    %4 = vector.multi_reduction <maximumf>, %0, %cst_3 [2] : vector<2x16x128xf32> to vector<2x16xf32>
    %5 = tpu.concatenate %3, %4 in 0 : vector<2x16xf32>, vector<2x16xf32> -> vector<4x16xf32>
    %c0_4 = arith.constant 0 : index
    %c0_5 = arith.constant 0 : index
    %6 = vector.load %arg2[%c0_4, %c0_5] : memref<16x2xf32, #tpu.memory_space<vmem>>, vector<16x2xf32>
    %cst_6 = arith.constant dense<0.000000e+00> : vector<4x2xf32>
    %7 = tpu.matmul %5, %6, %cst_6 {dimension_numbers = #tpu.dot_dimension_numbers<[1], [0], [0], [1], [0, 0, 1, 1], [], []>} : vector<4x16xf32>, vector<16x2xf32>, vector<4x2xf32> -> vector<4x2xf32>
    %cst_7 = arith.constant 0.000000e+00 : f32
    %8 = vector.broadcast %cst_7 : f32 to vector<4x2xf32>
    %9 = arith.maximumf %7, %8 : vector<4x2xf32>
    %c0_8 = arith.constant 0 : index
    %c0_9 = arith.constant 0 : index
    %10 = vector.load %arg3[%c0_8, %c0_9] : memref<2x16xf32, #tpu.memory_space<vmem>>, vector<2x16xf32>
    %cst_10 = arith.constant dense<0.000000e+00> : vector<4x16xf32>
    %11 = tpu.matmul %9, %10, %cst_10 {dimension_numbers = #tpu.dot_dimension_numbers<[1], [0], [0], [1], [0, 0, 1, 1], [], []>} : vector<4x2xf32>, vector<2x16xf32>, vector<4x16xf32> -> vector<4x16xf32>
    %12 = vector.extract_strided_slice %11 {offsets = [0, 0], sizes = [2, 16], strides = [1, 1]} : vector<4x16xf32> to vector<2x16xf32>
    %13 = vector.extract_strided_slice %11 {offsets = [2, 0], sizes = [2, 16], strides = [1, 1]} : vector<4x16xf32> to vector<2x16xf32>
    %14 = arith.addf %12, %13 : vector<2x16xf32>
    %15 = arith.negf %14 : vector<2x16xf32>
    %16 = math.exp %15 : vector<2x16xf32>
    %cst_11 = arith.constant 1.000000e+00 : f32
    %17 = vector.broadcast %cst_11 : f32 to vector<2x16xf32>
    %18 = arith.addf %17, %16 : vector<2x16xf32>
    %19 = arith.divf %17, %18 : vector<2x16xf32>
    %20 = vector.shape_cast %19 : vector<2x16xf32> to vector<2x16x1xf32>
    %21 = vector.broadcast %20 : vector<2x16x1xf32> to vector<2x16x128xf32>
    %22 = arith.mulf %0, %21 : vector<2x16x128xf32>
    %cst_12 = arith.constant dense<0.000000e+00> : vector<2x128xf32>
    %23 = vector.multi_reduction <add>, %22, %cst_12 [1] : vector<2x16x128xf32> to vector<2x128xf32>
    %cst_13 = arith.constant 1.600000e+01 : f32
    %24 = vector.broadcast %cst_13 : f32 to vector<2x128xf32>
    %25 = arith.divf %23, %24 : vector<2x128xf32>
    %cst_14 = arith.constant dense<0xFF800000> : vector<2x128xf32>
    %26 = vector.multi_reduction <maximumf>, %22, %cst_14 [1] : vector<2x16x128xf32> to vector<2x128xf32>
    %c0_15 = arith.constant 0 : index
    %c0_16 = arith.constant 0 : index
    %27 = vector.load %arg4[%c0_15, %c0_16] : memref<128x128xf32, #tpu.memory_space<vmem>>, vector<128x128xf32>
    %cst_17 = arith.constant dense<0.000000e+00> : vector<2x128xf32>
    %28 = tpu.matmul %25, %27, %cst_17 {dimension_numbers = #tpu.dot_dimension_numbers<[1], [0], [0], [1], [0, 0, 1, 1], [], []>} : vector<2x128xf32>, vector<128x128xf32>, vector<2x128xf32> -> vector<2x128xf32>
    %c0_18 = arith.constant 0 : index
    %c0_19 = arith.constant 0 : index
    %29 = vector.load %arg5[%c0_18, %c0_19] : memref<128x128xf32, #tpu.memory_space<vmem>>, vector<128x128xf32>
    %cst_20 = arith.constant dense<0.000000e+00> : vector<2x128xf32>
    %30 = tpu.matmul %26, %29, %cst_20 {dimension_numbers = #tpu.dot_dimension_numbers<[1], [0], [0], [1], [0, 0, 1, 1], [], []>} : vector<2x128xf32>, vector<128x128xf32>, vector<2x128xf32> -> vector<2x128xf32>
    %31 = arith.addf %28, %30 : vector<2x128xf32>
    %32 = arith.negf %31 : vector<2x128xf32>
    %33 = math.exp %32 : vector<2x128xf32>
    %cst_21 = arith.constant 1.000000e+00 : f32
    %34 = vector.broadcast %cst_21 : f32 to vector<2x128xf32>
    %35 = arith.addf %34, %33 : vector<2x128xf32>
    %36 = arith.divf %34, %35 : vector<2x128xf32>
    %37 = vector.shape_cast %36 : vector<2x128xf32> to vector<2x1x128xf32>
    %c0_22 = arith.constant 0 : index
    %c0_23 = arith.constant 0 : index
    %38 = vector.load %arg6[%c0_22, %c0_23] : memref<2x16xf32, #tpu.memory_space<vmem>>, vector<2x16xf32>
    %39 = vector.extract_strided_slice %38 {offsets = [0, 0], sizes = [1, 16], strides = [1, 1]} : vector<2x16xf32> to vector<1x16xf32>
    %40 = vector.shape_cast %39 : vector<1x16xf32> to vector<1x16x1xf32>
    %41 = vector.extract_strided_slice %38 {offsets = [1, 0], sizes = [1, 16], strides = [1, 1]} : vector<2x16xf32> to vector<1x16xf32>
    %42 = vector.shape_cast %41 : vector<1x16xf32> to vector<1x16x1xf32>
    %43 = vector.broadcast %37 : vector<2x1x128xf32> to vector<2x16x128xf32>
    %44 = arith.mulf %22, %43 : vector<2x16x128xf32>
    %45 = vector.broadcast %40 : vector<1x16x1xf32> to vector<2x16x128xf32>
    %46 = arith.mulf %44, %45 : vector<2x16x128xf32>
    %47 = vector.broadcast %42 : vector<1x16x1xf32> to vector<2x16x128xf32>
    %48 = arith.addf %46, %47 : vector<2x16x128xf32>
    %cst_24 = arith.constant 0.000000e+00 : f32
    %49 = vector.broadcast %cst_24 : f32 to vector<2x16x128xf32>
    %50 = arith.maximumf %48, %49 : vector<2x16x128xf32>
    %c0_25 = arith.constant 0 : index
    %c0_26 = arith.constant 0 : index
    %c0_27 = arith.constant 0 : index
    %51 = vector.load %arg7[%c0_25, %c0_26, %c0_27] : memref<2x16x128xf32, #tpu.memory_space<vmem>>, vector<2x16x128xf32>
    tpu.vector_store %arg7[%c0_25, %c0_26, %c0_27], %50 {strides = array<i32>} : memref<2x16x128xf32, #tpu.memory_space<vmem>>, vector<2x16x128xf32>,
    return
  }
  func.func @transform_0(%arg0: i32) -> (i32, i32, i32) {
    %c0_i32 = arith.constant 0 : i32
    %c0_i32_0 = arith.constant 0 : i32
    %c0_i32_1 = arith.constant 0 : i32
    return %arg0, %c0_i32, %c0_i32_0 : i32, i32, i32
  }
  func.func @transform_1(%arg0: i32) -> (i32, i32) {
    %c0_i32 = arith.constant 0 : i32
    %c0_i32_0 = arith.constant 0 : i32
    %c0_i32_1 = arith.constant 0 : i32
    return %c0_i32, %c0_i32_0 : i32, i32
  }
  func.func @transform_2(%arg0: i32) -> (i32, i32) {
    %c0_i32 = arith.constant 0 : i32
    %c0_i32_0 = arith.constant 0 : i32
    %c0_i32_1 = arith.constant 0 : i32
    return %c0_i32, %c0_i32_0 : i32, i32
  }
  func.func @transform_3(%arg0: i32) -> (i32, i32) {
    %c0_i32 = arith.constant 0 : i32
    %c0_i32_0 = arith.constant 0 : i32
    %c0_i32_1 = arith.constant 0 : i32
    return %c0_i32, %c0_i32_0 : i32, i32
  }
  func.func @transform_4(%arg0: i32) -> (i32, i32) {
    %c0_i32 = arith.constant 0 : i32
    %c0_i32_0 = arith.constant 0 : i32
    %c0_i32_1 = arith.constant 0 : i32
    return %c0_i32, %c0_i32_0 : i32, i32
  }
  func.func @transform_5(%arg0: i32) -> (i32, i32) {
    %c0_i32 = arith.constant 0 : i32
    %c0_i32_0 = arith.constant 0 : i32
    %c0_i32_1 = arith.constant 0 : i32
    return %c0_i32, %c0_i32_0 : i32, i32
  }
  func.func @transform_6(%arg0: i32) -> (i32, i32, i32) {
    %c0_i32 = arith.constant 0 : i32
    %c0_i32_0 = arith.constant 0 : i32
    %c0_i32_1 = arith.constant 0 : i32
    return %arg0, %c0_i32, %c0_i32_0 : i32, i32, i32
  }
}

</mosaic_0001>

<llo_original>
// kernel: tpu_custom_call.1
$region0: #{tpu_custom_call.1}
  #allocation0 [shape = 'u32[]', space=smem, size = 0x4, offset = 0x4, fixed_abs, tag = 'smem constant byte address 0x4 - core index']
  #allocation1 [shape = 'u32[144,128]{1,0:T(1,128)}', space=vmem, size = 0x12000, scoped, tag = 'internal scratch']
  %s0 = inlined_call_operand.hbm [shape: f32[4,16,128], index: 0, kind: input, shape index: {}]
  %s1 = inlined_call_operand.vmem [shape: f32[16,2], index: 1, kind: input, shape index: {}]
  %s2 = inlined_call_operand.vmem [shape: f32[2,16], index: 2, kind: input, shape index: {}]
  %s3 = inlined_call_operand.hbm [shape: f32[128,128], index: 3, kind: input, shape index: {}]
  %s4 = inlined_call_operand.hbm [shape: f32[128,128], index: 4, kind: input, shape index: {}]
  %s5 = inlined_call_operand.vmem [shape: f32[2,16], index: 5, kind: input, shape index: {}]
  %s6 = inlined_call_operand.hbm [shape: f32[4,16,128], index: 6, kind: output, shape index: {}]
  %s7 = sld [smem:[#allocation0]]
  $region69: #{tpu_custom_call.1} parent=0
    _
  %s9 = ssub.s32 1, %s7
  %s10 = scalar_select 0, %s9, %s7
  $region1: #{tpu_custom_call.1} parent=0
    #allocation2 [shape = 'u8[32768]{0}', space=vmem, size = 0x8000, scoped, tag = 'input window, operand 0']
    #allocation3 [shape = 's32[2]{0}', space=sflag, size = 0x8, scoped, tag = 'scoped memory for tpu_custom_call.1']
    #allocation4 [shape = 's32[2]{0}', space=sflag, size = 0x8, scoped, tag = 'scoped memory for tpu_custom_call.1']
    #allocation5 [shape = 'u8[65536]{0}', space=vmem, size = 0x10000, scoped, tag = 'input window, operand 3, single buffered']
    #allocation6 [shape = 's32[1]{0}', space=sflag, size = 0x4, scoped, tag = 'scoped memory for tpu_custom_call.1']
    #allocation7 [shape = 'u8[65536]{0}', space=vmem, size = 0x10000, scoped, tag = 'input window, operand 4, single buffered']
    #allocation8 [shape = 'u8[32768]{0}', space=vmem, size = 0x8000, scoped, tag = 'output window, operand 0']
    %11 = vsyncpa [#allocation3], 0
    %s12 = scalar_lea.sflag [#allocation3], 1
    %13 = vsyncpa %s12, 0
    %14 = vsyncpa [#allocation6], 0
    %15 = vsyncpa [#allocation4], 0
    %s16 = scalar_lea.sflag [#allocation4], 1
    %17 = vsyncpa %s16, 0
    loop: start=0, step=1, limit=4
    $region2: #{tpu_custom_call.1} parent=1 // loop_pre_header
      _
    $region3: #{tpu_custom_call.1} parent=1 // loop_header
      %s19 = sphi 0, %s23
      %p20 = scmp.ge.s32.totalorder %s19, 4
      %s29 = sphi 0, %s31
      %s32 = sphi 0, %s29
      %s33 = sphi 0, %s32
      %s49 = sphi 0, %s33
      %s53 = sphi 0, %s53
      %s55 = sphi 0, %s53
      %s56 = sphi 0, %s55
      %s70 = sphi 0, %s56
      %s74 = sphi 0, %s74
      %s76 = sphi 0, %s74
      %s77 = sphi 0, %s76
      %s91 = sphi 0, %s77
      %s95 = sphi 0, %s95
      %s97 = sphi 0, %s95
      %s98 = sphi 0, %s97
      %s112 = sphi 0, %s98
      %s116 = sphi 0, %s116
      %s118 = sphi 0, %s116
      %s119 = sphi 0, %s118
      %s133 = sphi 0, %s119
      %s137 = sphi 0, %s137
      %s139 = sphi 0, %s137
      %s140 = sphi 0, %s139
      %s154 = sphi 0, %s140
      %s160 = sphi 0, %s162
      %s163 = sphi 0, %s160
      %s164 = sphi 0, %s163
      %s180 = sphi 0, %s164
    $region4: #{tpu_custom_call.1} parent=1 // loop_header_branch
      %22 = sbr.rel (%p20) target = $region8
    $region5: #{tpu_custom_call.1} parent=1 // loop_body
      %s24 = ssub.s32 %s19, 1
      %s25 = ssub.s32 %s19, 2
      %s26 = sadd.s32 %s19, 1
      %s27 = ssub.s32 %s19, %s26
      %p28 = scmp.eq.s32.totalorder %s27, 0
      %s30 = sadd.s32 %s29, 1
      %s31 = scalar_select %p28, %s29, %s30
      %p34 = pneg %p28
      %p35 = scmp.eq.s32.totalorder %s19, 1
      %p36 = por %p34, %p35
      %p37 = scmp.ne.s32.totalorder %s29, %s32
      %p38 = scmp.eq.s32.totalorder %s19, 0
      %p39 = por %p37, %p38
      %p40 = scmp.ne.s32.totalorder %s29, %s32
      %p41 = scmp.eq.s32.totalorder %s24, 1
      %p42 = por %p40, %p41
      %p43 = scmp.ne.s32.totalorder %s32, %s33
      %p44 = scmp.eq.s32.totalorder %s24, 0
      %p45 = por %p43, %p44
      %p46 = scmp.ne.s32.totalorder %s32, %s33
      %p47 = scmp.eq.s32.totalorder %s25, 1
      %p48 = por %p46, %p47
      %p50 = scmp.ne.s32.totalorder %s33, %s49
      %p51 = scmp.eq.s32.totalorder %s25, 0
      %p52 = por %p50, %p51
      %s54 = sadd.s32 %s53, 1
      %p57 = scmp.eq.s32.totalorder %s19, 1
      %p58 = scmp.ne.s32.totalorder %s53, %s55
      %p59 = scmp.eq.s32.totalorder %s19, 0
      %p60 = por %p58, %p59
      %p61 = scmp.ne.s32.totalorder %s53, %s55
      %p62 = scmp.eq.s32.totalorder %s24, 1
      %p63 = por %p61, %p62
      %p64 = scmp.ne.s32.totalorder %s55, %s56
      %p65 = scmp.eq.s32.totalorder %s24, 0
      %p66 = por %p64, %p65
      %p67 = scmp.ne.s32.totalorder %s55, %s56
      %p68 = scmp.eq.s32.totalorder %s25, 1
      %p69 = por %p67, %p68
      %p71 = scmp.ne.s32.totalorder %s56, %s70
      %p72 = scmp.eq.s32.totalorder %s25, 0
      %p73 = por %p71, %p72
      %s75 = sadd.s32 %s74, 1
      %p78 = scmp.eq.s32.totalorder %s19, 1
      %p79 = scmp.ne.s32.totalorder %s74, %s76
      %p80 = scmp.eq.s32.totalorder %s19, 0
      %p81 = por %p79, %p80
      %p82 = scmp.ne.s32.totalorder %s74, %s76
      %p83 = scmp.eq.s32.totalorder %s24, 1
      %p84 = por %p82, %p83
      %p85 = scmp.ne.s32.totalorder %s76, %s77
      %p86 = scmp.eq.s32.totalorder %s24, 0
      %p87 = por %p85, %p86
      %p88 = scmp.ne.s32.totalorder %s76, %s77
      %p89 = scmp.eq.s32.totalorder %s25, 1
      %p90 = por %p88, %p89
      %p92 = scmp.ne.s32.totalorder %s77, %s91
      %p93 = scmp.eq.s32.totalorder %s25, 0
      %p94 = por %p92, %p93
      %s96 = sadd.s32 %s95, 1
      %p99 = scmp.eq.s32.totalorder %s19, 1
      %p100 = scmp.ne.s32.totalorder %s95, %s97
      %p101 = scmp.eq.s32.totalorder %s19, 0
      %p102 = por %p100, %p101
      %p103 = scmp.ne.s32.totalorder %s95, %s97
      %p104 = scmp.eq.s32.totalorder %s24, 1
      %p105 = por %p103, %p104
      %p106 = scmp.ne.s32.totalorder %s97, %s98
      %p107 = scmp.eq.s32.totalorder %s24, 0
      %p108 = por %p106, %p107
      %p109 = scmp.ne.s32.totalorder %s97, %s98
      %p110 = scmp.eq.s32.totalorder %s25, 1
      %p111 = por %p109, %p110
      %p113 = scmp.ne.s32.totalorder %s98, %s112
      %p114 = scmp.eq.s32.totalorder %s25, 0
      %p115 = por %p113, %p114
      %s117 = sadd.s32 %s116, 1
      %p120 = scmp.eq.s32.totalorder %s19, 1
      %p121 = scmp.ne.s32.totalorder %s116, %s118
      %p122 = scmp.eq.s32.totalorder %s19, 0
      %p123 = por %p121, %p122
      %p124 = scmp.ne.s32.totalorder %s116, %s118
      %p125 = scmp.eq.s32.totalorder %s24, 1
      %p126 = por %p124, %p125
      %p127 = scmp.ne.s32.totalorder %s118, %s119
      %p128 = scmp.eq.s32.totalorder %s24, 0
      %p129 = por %p127, %p128
      %p130 = scmp.ne.s32.totalorder %s118, %s119
      %p131 = scmp.eq.s32.totalorder %s25, 1
      %p132 = por %p130, %p131
      %p134 = scmp.ne.s32.totalorder %s119, %s133
      %p135 = scmp.eq.s32.totalorder %s25, 0
      %p136 = por %p134, %p135
      %s138 = sadd.s32 %s137, 1
      %p141 = scmp.eq.s32.totalorder %s19, 1
      %p142 = scmp.ne.s32.totalorder %s137, %s139
      %p143 = scmp.eq.s32.totalorder %s19, 0
      %p144 = por %p142, %p143
      %p145 = scmp.ne.s32.totalorder %s137, %s139
      %p146 = scmp.eq.s32.totalorder %s24, 1
      %p147 = por %p145, %p146
      %p148 = scmp.ne.s32.totalorder %s139, %s140
      %p149 = scmp.eq.s32.totalorder %s24, 0
      %p150 = por %p148, %p149
      %p151 = scmp.ne.s32.totalorder %s139, %s140
      %p152 = scmp.eq.s32.totalorder %s25, 1
      %p153 = por %p151, %p152
      %p155 = scmp.ne.s32.totalorder %s140, %s154
      %p156 = scmp.eq.s32.totalorder %s25, 0
      %p157 = por %p155, %p156
      %s158 = ssub.s32 %s19, %s26
      %p159 = scmp.eq.s32.totalorder %s158, 0
      %s161 = sadd.s32 %s160, 1
      %s162 = scalar_select %p159, %s160, %s161
      %p165 = pneg %p159
      %p166 = scmp.eq.s32.totalorder %s19, 1
      %p167 = por %p165, %p166
      %p168 = scmp.ne.s32.totalorder %s160, %s163
      %p169 = scmp.eq.s32.totalorder %s19, 0
      %p170 = por %p168, %p169
      %p171 = scmp.ne.s32.totalorder %s160, %s163
      %p172 = scmp.eq.s32.totalorder %s24, 1
      %p173 = por %p171, %p172
      %p174 = scmp.ne.s32.totalorder %s163, %s164
      %p175 = scmp.eq.s32.totalorder %s24, 0
      %p176 = por %p174, %p175
      %p177 = scmp.ne.s32.totalorder %s163, %s164
      %p178 = scmp.eq.s32.totalorder %s25, 1
      %p179 = por %p177, %p178
      %p181 = scmp.ne.s32.totalorder %s164, %s180
      %p182 = scmp.eq.s32.totalorder %s25, 0
      %p183 = por %p181, %p182
      %p184 = scmp.le.s32.totalorder 1, %s19
      %p185 = scmp.lt.s32.totalorder %s19, 3
      %p186 = pnand %p184, %p185
      %p187 = pneg %p186
      // Predicated region
      $region9: #{tpu_custom_call.1} parent=5 // pred_check
        _
      $region10: #{tpu_custom_call.1} parent=5 // pred_check_branch
        %189 = sbr.rel (%p186) target = $region12
      $region11: #{tpu_custom_call.1} parent=5 // pred_region
        %s190 = ssub.s32 %s19, 1
        // Predicated region
        $region13: #{tpu_custom_call.1} parent=11 // pred_check
          %p191 = pneg %p66
        $region14: #{tpu_custom_call.1} parent=11 // pred_check_branch
          %193 = sbr.rel (%p191) target = $region16
        $region15: #{tpu_custom_call.1} parent=11 // pred_region
          _
        $region16: #{tpu_custom_call.1} parent=11 // pred_fallthru
          _
        // Predicated region
        $region17: #{tpu_custom_call.1} parent=11 // pred_check
          %p194 = pneg %p87
        $region18: #{tpu_custom_call.1} parent=11 // pred_check_branch
          %196 = sbr.rel (%p194) target = $region20
        $region19: #{tpu_custom_call.1} parent=11 // pred_region
          _
        $region20: #{tpu_custom_call.1} parent=11 // pred_fallthru
          _
        // Predicated region
        $region21: #{tpu_custom_call.1} parent=11 // pred_check
          %p197 = pneg %p108
        $region22: #{tpu_custom_call.1} parent=11 // pred_check_branch
          %199 = sbr.rel (%p197) target = $region24
        $region23: #{tpu_custom_call.1} parent=11 // pred_region
          %s201 = ssub.s32 2048, 2048
          %202 = vsyncadd [#allocation6], %s201
          %s203 = sshll.u32 [#allocation5], 4
          %s204 = int_to_ptr.vmem [resolvable:$true] %s203
          %209 = dma.hbm_to_vmem [thread:$0]  %s3, 2048, %s204, [#allocation6], 128, 128, 8
        $region24: #{tpu_custom_call.1} parent=11 // pred_fallthru
          _
        // Predicated region
        $region25: #{tpu_custom_call.1} parent=11 // pred_check
          %p210 = pneg %p129
        $region26: #{tpu_custom_call.1} parent=11 // pred_check_branch
          %212 = sbr.rel (%p210) target = $region28
        $region27: #{tpu_custom_call.1} parent=11 // pred_region
          %s214 = ssub.s32 2048, 2048
          %215 = vsyncadd [#allocation6], %s214
          %s216 = sshll.u32 [#allocation7], 4
          %s217 = int_to_ptr.vmem [resolvable:$true] %s216
          %222 = dma.hbm_to_vmem [thread:$0]  %s4, 2048, %s217, [#allocation6], 128, 128, 8
        $region28: #{tpu_custom_call.1} parent=11 // pred_fallthru
          _
        // Predicated region
        $region29: #{tpu_custom_call.1} parent=11 // pred_check
          %p223 = pneg %p150
        $region30: #{tpu_custom_call.1} parent=11 // pred_check_branch
          %225 = sbr.rel (%p223) target = $region32
        $region31: #{tpu_custom_call.1} parent=11 // pred_region
          _
        $region32: #{tpu_custom_call.1} parent=11 // pred_fallthru
          _
      $region12: #{tpu_custom_call.1} parent=5 // pred_fallthru
        _
      %p226 = scmp.lt.s32.totalorder %s19, 2
      // Predicated region
      $region33: #{tpu_custom_call.1} parent=5 // pred_check
        %p227 = pneg %p226
      $region34: #{tpu_custom_call.1} parent=5 // pred_check_branch
        %229 = sbr.rel (%p227) target = $region36
      $region35: #{tpu_custom_call.1} parent=5 // pred_region
        // Predicated region
        $region37: #{tpu_custom_call.1} parent=35 // pred_check
          %p230 = pneg %p39
        $region38: #{tpu_custom_call.1} parent=35 // pred_check_branch
          %232 = sbr.rel (%p230) target = $region40
        $region39: #{tpu_custom_call.1} parent=35 // pred_region
          %s233 = sand.u32 %s29, 1
          %s234 = scalar_lea.sflag [#allocation3], %s233
          %s235 = sand.u32 %s29, 1
          %s236 = smul.addr %s235, 32
          %s237 = scalar_lea.vmem [#allocation2], %s236
          %s238 = smul.u32 2, %s19
          %s240 = ssub.s32 512, 512
          %241 = vsyncadd %s234, %s240
          %s242 = smul.addr %s238, 2
          %s243 = smul.addr %s242, 128
          %s244 = scalar_lea.hbm %s0, %s243
          %s245 = sshll.u32 %s237, 4
          %s246 = int_to_ptr.vmem [resolvable:$true] %s245
          %251 = dma.hbm_to_vmem [thread:$0]  %s244, 512, %s246, %s234, 128, 128, 8
        $region40: #{tpu_custom_call.1} parent=35 // pred_fallthru
          _
      $region36: #{tpu_custom_call.1} parent=5 // pred_fallthru
        _
      %p252 = scmp.le.s32.totalorder 1, %s19
      %p253 = scmp.lt.s32.totalorder %s19, 3
      %p254 = pnand %p252, %p253
      %p255 = pneg %p254
      // Predicated region
      $region41: #{tpu_custom_call.1} parent=5 // pred_check
        _
      $region42: #{tpu_custom_call.1} parent=5 // pred_check_branch
        %257 = sbr.rel (%p254) target = $region44
      $region43: #{tpu_custom_call.1} parent=5 // pred_region
        %s258 = ssub.s32 %s19, 1
        %s259 = sand.u32 %s32, 1
        %s260 = scalar_lea.sflag [#allocation3], %s259
        %s261 = sand.u32 %s32, 1
        %s262 = smul.addr %s261, 32
        %s263 = scalar_lea.vmem [#allocation2], %s262
        // Predicated region
        $region45: #{tpu_custom_call.1} parent=43 // pred_check
          %p264 = pneg %p45
        $region46: #{tpu_custom_call.1} parent=43 // pred_check_branch
          %266 = sbr.rel (%p264) target = $region48
        $region47: #{tpu_custom_call.1} parent=43 // pred_region
          %267 = dma.done %s260, 512
        $region48: #{tpu_custom_call.1} parent=43 // pred_fallthru
          _
        // Predicated region
        $region49: #{tpu_custom_call.1} parent=43 // pred_check
          %p268 = pneg %p108
        $region50: #{tpu_custom_call.1} parent=43 // pred_check_branch
          %270 = sbr.rel (%p268) target = $region52
        $region51: #{tpu_custom_call.1} parent=43 // pred_region
          %271 = dma.done [#allocation6], 2048
        $region52: #{tpu_custom_call.1} parent=43 // pred_fallthru
          _
        // Predicated region
        $region53: #{tpu_custom_call.1} parent=43 // pred_check
          %p272 = pneg %p129
        $region54: #{tpu_custom_call.1} parent=43 // pred_check_branch
          %274 = sbr.rel (%p272) target = $region56
        $region55: #{tpu_custom_call.1} parent=43 // pred_region
          %275 = dma.done [#allocation6], 2048
        $region56: #{tpu_custom_call.1} parent=43 // pred_fallthru
          _
        %s276 = sand.u32 %s32, 1
        %s277 = scalar_lea.sflag [#allocation3], %s276
        %s278 = sand.u32 %s32, 1
        %s279 = smul.addr %s278, 32
        %s280 = scalar_lea.vmem [#allocation2], %s279
        %p281 = pneg %p45
        %p282 = pneg %p42
        %p283 = pneg %p66
        %p284 = pneg %p63
        %p285 = pneg %p87
        %p286 = pneg %p84
        %p287 = pneg %p108
        %p288 = pneg %p105
        %p289 = pneg %p129
        %p290 = pneg %p126
        %p291 = pneg %p150
        %p292 = pneg %p147
        %p293 = pneg %p176
        %p294 = pneg %p173
        %s295 = sand.u32 %s163, 1
        %s296 = scalar_lea.sflag [#allocation4], %s295
        %s297 = sand.u32 %s163, 1
        %s298 = smul.addr %s297, 32
        %s299 = scalar_lea.vmem [#allocation8], %s298
        %s300 = smul.u32 2, %s24
        %s301 = smul.u32 2, %s24
        %v302 = vld [vmem:[%s263] sm:$0xff]
        %v303 = vld [vmem:[%s263 + $0x8] sm:$0xff]
        %v304 = vld [vmem:[%s263 + $0x10] sm:$0xff]
        %v305 = vld [vmem:[%s263 + $0x18] sm:$0xff]
        %306 = vadd.xlane.f32.xlu0 %v302
        %v307 = vpop.xlane.xlu0 %306
        %308 = vadd.xlane.f32.xlu0 %v303
        %v309 = vpop.xlane.xlu0 %308
        %310 = vadd.xlane.f32.xlu0 %v304
        %v311 = vpop.xlane.xlu0 %310
        %312 = vadd.xlane.f32.xlu0 %v305
        %v313 = vpop.xlane.xlu0 %312
        %v314 = vrcp.pop 128.0
        %v315 = vmul.f32 %v307, %v314
        %v316 = vmul.f32 %v309, %v314
        %v317 = vmul.f32 %v311, %v314
        %v318 = vmul.f32 %v313, %v314
        %319 = vmax.xlane.f32.xlu0 %v302
        %v320 = vpop.xlane.xlu0 %319
        %321 = vmax.xlane.f32.xlu0 %v303
        %v322 = vpop.xlane.xlu0 %321
        %323 = vmax.xlane.f32.xlu0 %v304
        %v324 = vpop.xlane.xlu0 %323
        %325 = vmax.xlane.f32.xlu0 %v305
        %v326 = vpop.xlane.xlu0 %325
        %v331 = vlaneseq
        %v332 = vand.u32 %v331, 127
        %v333 = vlaneseq
        %v334 = vshrl.u32 %v333, 7
        %v335 = vsub.s32 %v332, %v334
        %v336 = vrot.slane %v315, %v335
        %v337 = vadd.s32 %v332, 4294967288
        %v338 = vlaneseq
        %v339 = vshrl.u32 %v338, 7
        %v340 = vsub.s32 %v337, %v339
        %v341 = vrot.slane %v316, %v340
        %vm342 = vcmask 130112
        %v343 = vsel %vm342, %v341, %v336
        %v344 = vlaneseq
        %v345 = vshrl.u32 %v344, 7
        %v346 = vsub.s32 %v332, %v345
        %v347 = vrot.slane %v317, %v346
        %v348 = vlaneseq
        %v349 = vshrl.u32 %v348, 7
        %v350 = vsub.s32 %v337, %v349
        %v351 = vrot.slane %v318, %v350
        %v352 = vsel %vm342, %v351, %v347
        %vm353 = vcmask 1041409
        %v354 = vsel %vm353, %v352, %v343
        %v360 = vlaneseq
        %v361 = vshrl.u32 %v360, 7
        %v362 = vsub.s32 %v332, %v361
        %v363 = vrot.slane %v320, %v362
        %v364 = vlaneseq
        %v365 = vshrl.u32 %v364, 7
        %v366 = vsub.s32 %v337, %v365
        %v367 = vrot.slane %v322, %v366
        %v368 = vsel %vm342, %v367, %v363
        %v369 = vlaneseq
        %v370 = vshrl.u32 %v369, 7
        %v371 = vsub.s32 %v332, %v370
        %v372 = vrot.slane %v324, %v371
        %v373 = vlaneseq
        %v374 = vshrl.u32 %v373, 7
        %v375 = vsub.s32 %v337, %v374
        %v376 = vrot.slane %v326, %v375
        %v377 = vsel %vm342, %v376, %v372
        %vm378 = vcmask 1043459
        %v379 = vsel %vm378, %v377, %v368
        %vm381 = vcmask 1041408
        %v382 = vsel %vm381, %v354, %v379
        %v383 = vld [vmem:[%s1] sm:$0xff]
        %v384 = vld [vmem:[%s1 + $0x8] sm:$0xff]
        %vm385 = vcmask 130048
        %v387 = vsel %vm385, %v382, 0
        %389 = vmatprep.subr.mxu0 0.0
        %390 = vmatpush1.msra.mxu0 0.0
        %391 = vmatprep.subr.mxu0 0.0
        %392 = vmatpush1.msra.mxu0 0.0
        %393 = vmatprep.subr.mxu0 0.0
        %394 = vmatpush1.msra.mxu0 0.0
        %395 = vmatprep.subr.mxu0 0.0
        %396 = vmatpush1.msra.mxu0 0.0
        %397 = vmatprep.subr.mxu0 0.0
        %398 = vmatpush1.msra.mxu0 0.0
        %399 = vmatprep.subr.mxu0 0.0
        %400 = vmatpush1.msra.mxu0 0.0
        %401 = vmatprep.subr.mxu0 0.0
        %402 = vmatpush1.msra.mxu0 0.0
        %403 = vmatprep.subr.mxu0 0.0
        %404 = vmatpush1.msra.mxu0 0.0
        %405 = vmatprep.subr.mxu0 0.0
        %406 = vmatpush1.msra.mxu0 0.0
        %407 = vmatprep.subr.mxu0 0.0
        %408 = vmatpush1.msra.mxu0 0.0
        %409 = vmatprep.subr.mxu0 0.0
        %410 = vmatpush1.msra.mxu0 0.0
        %411 = vmatprep.subr.mxu0 0.0
        %412 = vmatpush1.msra.mxu0 0.0
        %413 = vmatprep.subr.mxu0 0.0
        %414 = vmatpush1.msra.mxu0 0.0
        %415 = vmatprep.subr.mxu0 0.0
        %416 = vmatpush1.msra.mxu0 0.0
        %417 = vmatprep.subr.mxu0 0.0
        %418 = vmatpush1.msra.mxu0 %v384
        %419 = vmatprep.subr.mxu0 0.0
        %420 = vmatpush1.msra.mxu0 %v383
        %421 = vmatprep.subr.mxu0 0.0
        %422 = vmatpush2.msra.mxu0 0.0
        %423 = vmatprep.subr.mxu0 0.0
        %424 = vmatpush2.msra.mxu0 0.0
        %425 = vmatprep.subr.mxu0 0.0
        %426 = vmatpush2.msra.mxu0 0.0
        %427 = vmatprep.subr.mxu0 0.0
        %428 = vmatpush2.msra.mxu0 0.0
        %429 = vmatprep.subr.mxu0 0.0
        %430 = vmatpush2.msra.mxu0 0.0
        %431 = vmatprep.subr.mxu0 0.0
        %432 = vmatpush2.msra.mxu0 0.0
        %433 = vmatprep.subr.mxu0 0.0
        %434 = vmatpush2.msra.mxu0 0.0
        %435 = vmatprep.subr.mxu0 0.0
        %436 = vmatpush2.msra.mxu0 0.0
        %437 = vmatprep.subr.mxu0 0.0
        %438 = vmatpush2.msra.mxu0 0.0
        %439 = vmatprep.subr.mxu0 0.0
        %440 = vmatpush2.msra.mxu0 0.0
        %441 = vmatprep.subr.mxu0 0.0
        %442 = vmatpush2.msra.mxu0 0.0
        %443 = vmatprep.subr.mxu0 0.0
        %444 = vmatpush2.msra.mxu0 0.0
        %445 = vmatprep.subr.mxu0 0.0
        %446 = vmatpush2.msra.mxu0 0.0
        %447 = vmatprep.subr.mxu0 0.0
        %448 = vmatpush2.msra.mxu0 0.0
        %449 = vmatprep.subr.mxu0 0.0
        %450 = vmatpush2.msra.mxu0 0.0
        %451 = vmatprep.subr.mxu0 0.0
        %452 = vmatpush2.msra.mxu0 0.0
        %453 = vmatprep.mubr.f32.mxu0 0.0
        %454 = vmatmul.mubr.f32.gmra.mxu0 %v387
        %v455 = vpop.f32.mrf.mxu0
        %v456 = vadd.f32 0.0, %v455
        %v457 = vpop.f32.mrf.mxu0
        %458 = vdwg.mxu0
        %v459 = vmax.f32 %v456, 0.0
        %v460 = vld [vmem:[%s2] sm:$0x3]
        %vm461 = vcmask 15360
        %v463 = vsel %vm461, %v459, 0
        %v466 = vsel %vm381, %v460, 0
        %468 = vmatprep.subr.mxu0 0.0
        %469 = vmatpush1.msra.mxu0 0.0
        %470 = vmatprep.subr.mxu0 0.0
        %471 = vmatpush1.msra.mxu0 0.0
        %472 = vmatprep.subr.mxu0 0.0
        %473 = vmatpush1.msra.mxu0 0.0
        %474 = vmatprep.subr.mxu0 0.0
        %475 = vmatpush1.msra.mxu0 0.0
        %476 = vmatprep.subr.mxu0 0.0
        %477 = vmatpush1.msra.mxu0 0.0
        %478 = vmatprep.subr.mxu0 0.0
        %479 = vmatpush1.msra.mxu0 0.0
        %480 = vmatprep.subr.mxu0 0.0
        %481 = vmatpush1.msra.mxu0 0.0
        %482 = vmatprep.subr.mxu0 0.0
        %483 = vmatpush1.msra.mxu0 0.0
        %484 = vmatprep.subr.mxu0 0.0
        %485 = vmatpush1.msra.mxu0 0.0
        %486 = vmatprep.subr.mxu0 0.0
        %487 = vmatpush1.msra.mxu0 0.0
        %488 = vmatprep.subr.mxu0 0.0
        %489 = vmatpush1.msra.mxu0 0.0
        %490 = vmatprep.subr.mxu0 0.0
        %491 = vmatpush1.msra.mxu0 0.0
        %492 = vmatprep.subr.mxu0 0.0
        %493 = vmatpush1.msra.mxu0 0.0
        %494 = vmatprep.subr.mxu0 0.0
        %495 = vmatpush1.msra.mxu0 0.0
        %496 = vmatprep.subr.mxu0 0.0
        %497 = vmatpush1.msra.mxu0 0.0
        %498 = vmatprep.subr.mxu0 0.0
        %499 = vmatpush1.msra.mxu0 %v466
        %500 = vmatprep.subr.mxu0 0.0
        %501 = vmatpush2.msra.mxu0 0.0
        %502 = vmatprep.subr.mxu0 0.0
        %503 = vmatpush2.msra.mxu0 0.0
        %504 = vmatprep.subr.mxu0 0.0
        %505 = vmatpush2.msra.mxu0 0.0
        %506 = vmatprep.subr.mxu0 0.0
        %507 = vmatpush2.msra.mxu0 0.0
        %508 = vmatprep.subr.mxu0 0.0
        %509 = vmatpush2.msra.mxu0 0.0
        %510 = vmatprep.subr.mxu0 0.0
        %511 = vmatpush2.msra.mxu0 0.0
        %512 = vmatprep.subr.mxu0 0.0
        %513 = vmatpush2.msra.mxu0 0.0
        %514 = vmatprep.subr.mxu0 0.0
        %515 = vmatpush2.msra.mxu0 0.0
        %516 = vmatprep.subr.mxu0 0.0
        %517 = vmatpush2.msra.mxu0 0.0
        %518 = vmatprep.subr.mxu0 0.0
        %519 = vmatpush2.msra.mxu0 0.0
        %520 = vmatprep.subr.mxu0 0.0
        %521 = vmatpush2.msra.mxu0 0.0
        %522 = vmatprep.subr.mxu0 0.0
        %523 = vmatpush2.msra.mxu0 0.0
        %524 = vmatprep.subr.mxu0 0.0
        %525 = vmatpush2.msra.mxu0 0.0
        %526 = vmatprep.subr.mxu0 0.0
        %527 = vmatpush2.msra.mxu0 0.0
        %528 = vmatprep.subr.mxu0 0.0
        %529 = vmatpush2.msra.mxu0 0.0
        %530 = vmatprep.subr.mxu0 0.0
        %531 = vmatpush2.msra.mxu0 0.0
        %532 = vmatprep.mubr.f32.mxu0 0.0
        %533 = vmatmul.mubr.f32.gmra.mxu0 %v463
        %v534 = vpop.f32.mrf.mxu0
        %v535 = vadd.f32 0.0, %v534
        %v536 = vpop.f32.mrf.mxu0
        %537 = vdwg.mxu0
        %v539 = vrot.slane %v535, 2
        %v541 = vadd.f32 %v535, %v539
        %v542 = vxor.u32 %v541, 2147483648
        %v543 = vmul.f32 %v542, 1.442695
        %v544 = vpow.pop %v543
        %v545 = vadd.f32 %v544, 1.0
        %v546 = vrcp.pop %v545
        %v547 = vmul.f32 1.0, %v546
        %v548 = vlaneseq
        %v549 = vshrl.u32 %v548, 7
        %v550 = vsub.s32 0, %v549
        %v551 = vrot.slane %v547, %v550
        %553 = vbcast.lane.b32.xlu0 %v551, 256
        %v554 = vpop.permute.xlu0 %553
        %s556 = sor.u32 256, 8
        %557 = vbcast.lane.b32.xlu0 %v551, %s556
        %v558 = vpop.permute.xlu0 %557
        %v559 = vlaneseq
        %v560 = vshrl.u32 %v559, 7
        %v561 = vsub.s32 1, %v560
        %v562 = vrot.slane %v547, %v561
        %564 = vbcast.lane.b32.xlu0 %v562, 256
        %v565 = vpop.permute.xlu0 %564
        %s567 = sor.u32 256, 8
        %568 = vbcast.lane.b32.xlu0 %v562, %s567
        %v569 = vpop.permute.xlu0 %568
        %v570 = vmul.f32 %v302, %v554
        %v571 = vmul.f32 %v303, %v558
        %v572 = vmul.f32 %v304, %v565
        %v573 = vmul.f32 %v305, %v569
        %v574 = vadd.f32 %v570, %v571
        %v575 = vrot.slane %v574, 4
        %v576 = vadd.f32 %v574, %v575
        %v577 = vrot.slane %v576, 2
        %v578 = vadd.f32 %v576, %v577
        %v579 = vrot.slane %v578, 1
        %v580 = vadd.f32 %v578, %v579
        %v581 = vadd.f32 %v572, %v573
        %v582 = vrot.slane %v581, 4
        %v583 = vadd.f32 %v581, %v582
        %v584 = vrot.slane %v583, 2
        %v585 = vadd.f32 %v583, %v584
        %v586 = vrot.slane %v585, 1
        %v587 = vadd.f32 %v585, %v586
        %v588 = vrcp.pop 16.0
        %v589 = vmul.f32 %v580, %v588
        %v590 = vmul.f32 %v587, %v588
        %v591 = vmax.f32 %v570, %v571
        %v592 = vrot.slane %v591, 4
        %v593 = vmax.f32 %v591, %v592
        %v594 = vrot.slane %v593, 2
        %v595 = vmax.f32 %v593, %v594
        %v596 = vrot.slane %v595, 1
        %v597 = vmax.f32 %v595, %v596
        %v598 = vmax.f32 %v572, %v573
        %v599 = vrot.slane %v598, 4
        %v600 = vmax.f32 %v598, %v599
        %v601 = vrot.slane %v600, 2
        %v602 = vmax.f32 %v600, %v601
        %v603 = vrot.slane %v602, 1
        %v604 = vmax.f32 %v602, %v603
        %v605 = vld [vmem:[#allocation5] sm:$0xff]
        %v606 = vld [vmem:[#allocation5 + $0x8] sm:$0xff]
        %v607 = vld [vmem:[#allocation5 + $0x10] sm:$0xff]
        %v608 = vld [vmem:[#allocation5 + $0x18] sm:$0xff]
        %v609 = vld [vmem:[#allocation5 + $0x20] sm:$0xff]
        %v610 = vld [vmem:[#allocation5 + $0x28] sm:$0xff]
        %v611 = vld [vmem:[#allocation5 + $0x30] sm:$0xff]
        %v612 = vld [vmem:[#allocation5 + $0x38] sm:$0xff]
        %v613 = vld [vmem:[#allocation5 + $0x40] sm:$0xff]
        %v614 = vld [vmem:[#allocation5 + $0x48] sm:$0xff]
        %v615 = vld [vmem:[#allocation5 + $0x50] sm:$0xff]
        %v616 = vld [vmem:[#allocation5 + $0x58] sm:$0xff]
        %v617 = vld [vmem:[#allocation5 + $0x60] sm:$0xff]
        %v618 = vld [vmem:[#allocation5 + $0x68] sm:$0xff]
        %v619 = vld [vmem:[#allocation5 + $0x70] sm:$0xff]
        %v620 = vld [vmem:[#allocation5 + $0x78] sm:$0xff]
        %v621 = vld [vmem:[#allocation7] sm:$0xff]
        %v622 = vld [vmem:[#allocation7 + $0x8] sm:$0xff]
        %v623 = vld [vmem:[#allocation7 + $0x10] sm:$0xff]
        %v624 = vld [vmem:[#allocation7 + $0x18] sm:$0xff]
        %v625 = vld [vmem:[#allocation7 + $0x20] sm:$0xff]
        %v626 = vld [vmem:[#allocation7 + $0x28] sm:$0xff]
        %v627 = vld [vmem:[#allocation7 + $0x30] sm:$0xff]
        %v628 = vld [vmem:[#allocation7 + $0x38] sm:$0xff]
        %v629 = vld [vmem:[#allocation7 + $0x40] sm:$0xff]
        %v630 = vld [vmem:[#allocation7 + $0x48] sm:$0xff]
        %v631 = vld [vmem:[#allocation7 + $0x50] sm:$0xff]
        %v632 = vld [vmem:[#allocation7 + $0x58] sm:$0xff]
        %v633 = vld [vmem:[#allocation7 + $0x60] sm:$0xff]
        %v634 = vld [vmem:[#allocation7 + $0x68] sm:$0xff]
        %v635 = vld [vmem:[#allocation7 + $0x70] sm:$0xff]
        %v636 = vld [vmem:[#allocation7 + $0x78] sm:$0xff]
        %v639 = vsel %vm353, %v604, %v597
        %641 = vmatprep.subr.mxu0 0.0
        %642 = vmatpush1.msra.mxu0 %v636
        %643 = vmatprep.subr.mxu0 0.0
        %644 = vmatpush1.msra.mxu0 %v635
        %645 = vmatprep.subr.mxu0 0.0
        %646 = vmatpush1.msra.mxu0 %v634
        %647 = vmatprep.subr.mxu0 0.0
        %648 = vmatpush1.msra.mxu0 %v633
        %649 = vmatprep.subr.mxu0 0.0
        %650 = vmatpush1.msra.mxu0 %v632
        %651 = vmatprep.subr.mxu0 0.0
        %652 = vmatpush1.msra.mxu0 %v631
        %653 = vmatprep.subr.mxu0 0.0
        %654 = vmatpush1.msra.mxu0 %v630
        %655 = vmatprep.subr.mxu0 0.0
        %656 = vmatpush1.msra.mxu0 %v629
        %657 = vmatprep.subr.mxu0 0.0
        %658 = vmatpush1.msra.mxu0 %v628
        %659 = vmatprep.subr.mxu0 0.0
        %660 = vmatpush1.msra.mxu0 %v627
        %661 = vmatprep.subr.mxu0 0.0
        %662 = vmatpush1.msra.mxu0 %v626
        %663 = vmatprep.subr.mxu0 0.0
        %664 = vmatpush1.msra.mxu0 %v625
        %665 = vmatprep.subr.mxu0 0.0
        %666 = vmatpush1.msra.mxu0 %v624
        %667 = vmatprep.subr.mxu0 0.0
        %668 = vmatpush1.msra.mxu0 %v623
        %669 = vmatprep.subr.mxu0 0.0
        %670 = vmatpush1.msra.mxu0 %v622
        %671 = vmatprep.subr.mxu0 0.0
        %672 = vmatpush1.msra.mxu0 %v621
        %673 = vmatprep.subr.mxu0 0.0
        %674 = vmatpush2.msra.mxu0 0.0
        %675 = vmatprep.subr.mxu0 0.0
        %676 = vmatpush2.msra.mxu0 0.0
        %677 = vmatprep.subr.mxu0 0.0
        %678 = vmatpush2.msra.mxu0 0.0
        %679 = vmatprep.subr.mxu0 0.0
        %680 = vmatpush2.msra.mxu0 0.0
        %681 = vmatprep.subr.mxu0 0.0
        %682 = vmatpush2.msra.mxu0 0.0
        %683 = vmatprep.subr.mxu0 0.0
        %684 = vmatpush2.msra.mxu0 0.0
        %685 = vmatprep.subr.mxu0 0.0
        %686 = vmatpush2.msra.mxu0 0.0
        %687 = vmatprep.subr.mxu0 0.0
        %688 = vmatpush2.msra.mxu0 0.0
        %689 = vmatprep.subr.mxu0 0.0
        %690 = vmatpush2.msra.mxu0 0.0
        %691 = vmatprep.subr.mxu0 0.0
        %692 = vmatpush2.msra.mxu0 0.0
        %693 = vmatprep.subr.mxu0 0.0
        %694 = vmatpush2.msra.mxu0 0.0
        %695 = vmatprep.subr.mxu0 0.0
        %696 = vmatpush2.msra.mxu0 0.0
        %697 = vmatprep.subr.mxu0 0.0
        %698 = vmatpush2.msra.mxu0 0.0
        %699 = vmatprep.subr.mxu0 0.0
        %700 = vmatpush2.msra.mxu0 0.0
        %701 = vmatprep.subr.mxu0 0.0
        %702 = vmatpush2.msra.mxu0 0.0
        %703 = vmatprep.subr.mxu0 0.0
        %704 = vmatpush2.msra.mxu0 0.0
        %705 = vmatprep.mubr.f32.mxu0 0.0
        %706 = vmatmul.mubr.f32.gmra.mxu0 %v639
        %v707 = vpop.f32.mrf.mxu0
        %v708 = vadd.f32 0.0, %v707
        %v709 = vpop.f32.mrf.mxu0
        %710 = vdwg.mxu0
        %v713 = vsel %vm353, %v590, %v589
        %715 = vmatprep.subr.mxu0 0.0
        %716 = vmatpush1.msra.mxu0 %v620
        %717 = vmatprep.subr.mxu0 0.0
        %718 = vmatpush1.msra.mxu0 %v619
        %719 = vmatprep.subr.mxu0 0.0
        %720 = vmatpush1.msra.mxu0 %v618
        %721 = vmatprep.subr.mxu0 0.0
        %722 = vmatpush1.msra.mxu0 %v617
        %723 = vmatprep.subr.mxu0 0.0
        %724 = vmatpush1.msra.mxu0 %v616
        %725 = vmatprep.subr.mxu0 0.0
        %726 = vmatpush1.msra.mxu0 %v615
        %727 = vmatprep.subr.mxu0 0.0
        %728 = vmatpush1.msra.mxu0 %v614
        %729 = vmatprep.subr.mxu0 0.0
        %730 = vmatpush1.msra.mxu0 %v613
        %731 = vmatprep.subr.mxu0 0.0
        %732 = vmatpush1.msra.mxu0 %v612
        %733 = vmatprep.subr.mxu0 0.0
        %734 = vmatpush1.msra.mxu0 %v611
        %735 = vmatprep.subr.mxu0 0.0
        %736 = vmatpush1.msra.mxu0 %v610
        %737 = vmatprep.subr.mxu0 0.0
        %738 = vmatpush1.msra.mxu0 %v609
        %739 = vmatprep.subr.mxu0 0.0
        %740 = vmatpush1.msra.mxu0 %v608
        %741 = vmatprep.subr.mxu0 0.0
        %742 = vmatpush1.msra.mxu0 %v607
        %743 = vmatprep.subr.mxu0 0.0
        %744 = vmatpush1.msra.mxu0 %v606
        %745 = vmatprep.subr.mxu0 0.0
        %746 = vmatpush1.msra.mxu0 %v605
        %747 = vmatprep.subr.mxu0 0.0
        %748 = vmatpush2.msra.mxu0 0.0
        %749 = vmatprep.subr.mxu0 0.0
        %750 = vmatpush2.msra.mxu0 0.0
        %751 = vmatprep.subr.mxu0 0.0
        %752 = vmatpush2.msra.mxu0 0.0
        %753 = vmatprep.subr.mxu0 0.0
        %754 = vmatpush2.msra.mxu0 0.0
        %755 = vmatprep.subr.mxu0 0.0
        %756 = vmatpush2.msra.mxu0 0.0
        %757 = vmatprep.subr.mxu0 0.0
        %758 = vmatpush2.msra.mxu0 0.0
        %759 = vmatprep.subr.mxu0 0.0
        %760 = vmatpush2.msra.mxu0 0.0
        %761 = vmatprep.subr.mxu0 0.0
        %762 = vmatpush2.msra.mxu0 0.0
        %763 = vmatprep.subr.mxu0 0.0
        %764 = vmatpush2.msra.mxu0 0.0
        %765 = vmatprep.subr.mxu0 0.0
        %766 = vmatpush2.msra.mxu0 0.0
        %767 = vmatprep.subr.mxu0 0.0
        %768 = vmatpush2.msra.mxu0 0.0
        %769 = vmatprep.subr.mxu0 0.0
        %770 = vmatpush2.msra.mxu0 0.0
        %771 = vmatprep.subr.mxu0 0.0
        %772 = vmatpush2.msra.mxu0 0.0
        %773 = vmatprep.subr.mxu0 0.0
        %774 = vmatpush2.msra.mxu0 0.0
        %775 = vmatprep.subr.mxu0 0.0
        %776 = vmatpush2.msra.mxu0 0.0
        %777 = vmatprep.subr.mxu0 0.0
        %778 = vmatpush2.msra.mxu0 0.0
        %779 = vmatprep.mubr.f32.mxu0 0.0
        %780 = vmatmul.mubr.f32.gmra.mxu0 %v713
        %v781 = vpop.f32.mrf.mxu0
        %v782 = vadd.f32 %v708, %v781
        %v783 = vpop.f32.mrf.mxu0
        %784 = vdwg.mxu0
        %v785 = vxor.u32 %v782, 2147483648
        %v786 = vmul.f32 %v785, 1.442695
        %v787 = vpow.pop %v786
        %v788 = vadd.f32 %v787, 1.0
        %v789 = vrcp.pop %v788
        %v790 = vmul.f32 1.0, %v789
        %v793 = vunpack.c.l.s4 1966171168
        %v794 = vunpack.c.0.s8 %v793
        %v795 = vlaneseq
        %v796 = vshrl.u32 %v795, 7
        %v797 = vsub.s32 %v794, %v796
        %v798 = vrot.slane %v790, %v797
        %v799 = vcombine.high %v798, %v798
        %v801 = vunpack.c.l.s4 1966171168
        %v802 = vunpack.c.0.s8 %v801
        %v803 = vlaneseq
        %v804 = vshrl.u32 %v803, 7
        %v805 = vsub.s32 %v802, %v804
        %v806 = vrot.slane %v798, %v805
        %v808 = vunpack.c.l.s4 1966171168
        %v809 = vunpack.c.0.s8 %v808
        %v810 = vlaneseq
        %v811 = vshrl.u32 %v810, 7
        %v812 = vsub.s32 %v809, %v811
        %v813 = vrot.slane %v799, %v812
        %v814 = vld [vmem:[%s5] sm:$0x3]
        %v815 = vlaneseq
        %v816 = vshrl.u32 %v815, 7
        %v817 = vsub.s32 0, %v816
        %v818 = vrot.slane %v814, %v817
        %820 = vbcast.lane.b32.xlu0 %v818, 256
        %v821 = vpop.permute.xlu0 %820
        %s823 = sor.u32 256, 8
        %824 = vbcast.lane.b32.xlu0 %v818, %s823
        %v825 = vpop.permute.xlu0 %824
        %v826 = vlaneseq
        %v827 = vshrl.u32 %v826, 7
        %v828 = vsub.s32 1, %v827
        %v829 = vrot.slane %v814, %v828
        %831 = vbcast.lane.b32.xlu0 %v829, 256
        %v832 = vpop.permute.xlu0 %831
        %s834 = sor.u32 256, 8
        %835 = vbcast.lane.b32.xlu0 %v829, %s834
        %v836 = vpop.permute.xlu0 %835
        %v837 = vlaneseq
        %v838 = vshrl.u32 %v837, 7
        %v839 = vsub.s32 0, %v838
        %v840 = vrot.slane %v806, %v839
        %v841 = vlaneseq
        %v842 = vshrl.u32 %v841, 7
        %v843 = vsub.s32 0, %v842
        %v844 = vrot.slane %v813, %v843
        %v847 = vmul.f32 %v570, %v840
        %v848 = vmul.f32 %v571, %v840
        %v849 = vmul.f32 %v572, %v844
        %v850 = vmul.f32 %v573, %v844
        %v851 = vmul.f32 %v847, %v821
        %v852 = vmul.f32 %v848, %v825
        %v853 = vmul.f32 %v849, %v821
        %v854 = vmul.f32 %v850, %v825
        %v855 = vadd.f32 %v851, %v832
        %v856 = vadd.f32 %v852, %v836
        %v857 = vadd.f32 %v853, %v832
        %v858 = vadd.f32 %v854, %v836
        %v859 = vmax.f32 %v855, 0.0
        %v860 = vmax.f32 %v856, 0.0
        %v861 = vmax.f32 %v857, 0.0
        %v862 = vmax.f32 %v858, 0.0
        %863 = vst [vmem:[%s299] sm:$0xff] %v859
        %864 = vst [vmem:[%s299 + $0x8] sm:$0xff] %v860
        %865 = vst [vmem:[%s299 + $0x10] sm:$0xff] %v861
        %866 = vst [vmem:[%s299 + $0x18] sm:$0xff] %v862
        %s867 = sand.u32 %s163, 1
        %s868 = scalar_lea.sflag [#allocation4], %s867
        %s869 = sand.u32 %s163, 1
        %s870 = smul.addr %s869, 32
        %s871 = scalar_lea.vmem [#allocation8], %s870
        // Predicated region
        $region57: #{tpu_custom_call.1} parent=43 // pred_check
          %p872 = pneg %p173
        $region58: #{tpu_custom_call.1} parent=43 // pred_check_branch
          %874 = sbr.rel (%p872) target = $region60
        $region59: #{tpu_custom_call.1} parent=43 // pred_region
          %s875 = smul.u32 2, %s24
          %s877 = ssub.s32 512, 512
          %878 = vsyncadd %s868, %s877
          %s879 = smul.addr %s875, 2
          %s880 = smul.addr %s879, 128
          %s881 = scalar_lea.hbm %s6, %s880
          %s882 = sshll.u32 %s871, 4
          %s883 = int_to_ptr.vmem [resolvable:$true] %s882
          %888 = dma.vmem_to_hbm [thread:$0]  %s883, 512, %s881, %s868, 128, 128, 8
        $region60: #{tpu_custom_call.1} parent=43 // pred_fallthru
          _
      $region44: #{tpu_custom_call.1} parent=5 // pred_fallthru
        _
      %p889 = scmp.le.s32.totalorder 2, %s19
      // Predicated region
      $region61: #{tpu_custom_call.1} parent=5 // pred_check
        %p890 = pneg %p889
      $region62: #{tpu_custom_call.1} parent=5 // pred_check_branch
        %892 = sbr.rel (%p890) target = $region64
      $region63: #{tpu_custom_call.1} parent=5 // pred_region
        %s893 = ssub.s32 %s19, 2
        // Predicated region
        $region65: #{tpu_custom_call.1} parent=63 // pred_check
          %p894 = pneg %p179
        $region66: #{tpu_custom_call.1} parent=63 // pred_check_branch
          %896 = sbr.rel (%p894) target = $region68
        $region67: #{tpu_custom_call.1} parent=63 // pred_region
          %s897 = sand.u32 %s164, 1
          %s898 = scalar_lea.sflag [#allocation4], %s897
          %s899 = sand.u32 %s164, 1
          %s900 = smul.addr %s899, 32
          %s901 = scalar_lea.vmem [#allocation8], %s900
          %902 = dma.done %s898, 512
        $region68: #{tpu_custom_call.1} parent=63 // pred_fallthru
          _
      $region64: #{tpu_custom_call.1} parent=5 // pred_fallthru
        _
    $region6: #{tpu_custom_call.1} parent=1 // loop_footer
      %s23 = sadd.s32 1, %s19
    $region7: #{tpu_custom_call.1} parent=1 // loop_footer_branch
      %18 = sbr.rel target = $region3
    $region8: #{tpu_custom_call.1} parent=1 // loop_exit
      _
    %903 = vsyncpa [#allocation3], 1
    %s904 = scalar_lea.sflag [#allocation3], 1
    %905 = vsyncpa %s904, 1
    %906 = vsyncpa [#allocation6], 1
    %907 = vsyncpa [#allocation4], 1
    %s908 = scalar_lea.sflag [#allocation4], 1
    %909 = vsyncpa %s908, 1

</llo_original>
